<compile_context>
chip_gen: v7x
topology: tpu7x:2x2x1
jax: 0.10.0
libtpu: 0.0.40
codegen_flags: <defaults>
</compile_context>

<pallas_src>
import jax
import jax.numpy as jnp
from jax.experimental import pallas as pl
from jax.experimental.pallas import tpu as pltpu


# ------------------------------ tiling helper --------------------------------
def _pick_tile(dim, cap, align):
    """Largest multiple of `align` that divides `dim` and is <= cap; else `dim`."""
    if dim <= cap:
        return dim
    best = None
    t = align
    while t <= cap:
        if dim % t == 0:
            best = t
        t += align
    return best if best is not None else dim


# --------------------------- tiled linear (GEMM+bias) ------------------------
def _linear_kernel(x_ref, w_ref, b_ref, o_ref, acc_ref):
    k = pl.program_id(2)

    @pl.when(k == 0)
    def _():
        acc_ref[...] = jnp.zeros_like(acc_ref)

    acc_ref[...] += jnp.dot(x_ref[...], w_ref[...],
                            preferred_element_type=jnp.float32)

    @pl.when(k == pl.num_programs(2) - 1)
    def _():
        o_ref[...] = (acc_ref[...] + b_ref[...]).astype(o_ref.dtype)


def linear(x, w, b, *, tm_cap=256, tn_cap=512, tk_cap=512):
    """x: (M, K), w: (K, N), b: (N,) -> (M, N).  Tiled, f32-accumulated GEMM."""
    M, K = x.shape
    _, N = w.shape
    tm = _pick_tile(M, tm_cap, 8)      # sublane-aligned rows
    tn = _pick_tile(N, tn_cap, 128)    # lane-aligned (prefer 256/512 for 2x256 MXU)
    tk = _pick_tile(K, tk_cap, 128)
    b2 = b.reshape(1, N)
    return pl.pallas_call(
        _linear_kernel,
        out_shape=jax.ShapeDtypeStruct((M, N), x.dtype),
        grid_spec=pltpu.PrefetchScalarGridSpec(
            num_scalar_prefetch=0,
            grid=(M // tm, N // tn, K // tk),
            in_specs=[
                pl.BlockSpec((tm, tk), lambda i, j, k: (i, k)),
                pl.BlockSpec((tk, tn), lambda i, j, k: (k, j)),
                pl.BlockSpec((1, tn), lambda i, j, k: (0, j)),
            ],
            out_specs=pl.BlockSpec((tm, tn), lambda i, j, k: (i, j)),
            scratch_shapes=[pltpu.VMEM((tm, tn), jnp.float32)],
        ),
        compiler_params=pltpu.CompilerParams(
            dimension_semantics=("parallel", "parallel", "arbitrary"),
            vmem_limit_bytes=48 * 1024 * 1024,   # fits v7x 64 MiB physical VMEM
        ),
    )(x, w, b2)


# ------------------------------ LSTM recurrence -------------------------------
# gates_x already contains x @ w_ih + (b_ih + b_hh); only h @ w_hh is sequential.
def _lstm_kernel(gx_ref, whh_ref, out_ref, h_sc, c_sc):
    @pl.when(pl.program_id(0) == 0)
    def _():
        h_sc[...] = jnp.zeros_like(h_sc)
        c_sc[...] = jnp.zeros_like(c_sc)

    H = h_sc.shape[1]
    tc = gx_ref.shape[0]
    whh = whh_ref[...]                      # hoisted: resident for all Tc steps

    def step(s, carry):
        gates = gx_ref[s] + jnp.dot(h_sc[...], whh,
                                    preferred_element_type=jnp.float32)
        i = jax.nn.sigmoid(gates[:, 0 * H:1 * H])
        f = jax.nn.sigmoid(gates[:, 1 * H:2 * H])
        g = jnp.tanh(gates[:, 2 * H:3 * H])
        o = jax.nn.sigmoid(gates[:, 3 * H:4 * H])
        c = f * c_sc[...] + i * g
        h = o * jnp.tanh(c)
        c_sc[...] = c
        h_sc[...] = h
        out_ref[s] = h.astype(out_ref.dtype)     # buffered: dense (Tc,B,H) writeback
        return carry

    jax.lax.fori_loop(0, tc, step, 0, unroll=True)


def lstm_recurrence(gates_x, w_hh, *, tc_cap=16):
    """gates_x: (T, B, 4H) precomputed input gates; w_hh: (H, 4H) -> h seq (T, B, H)."""
    T, B, G = gates_x.shape
    H = w_hh.shape[0]
    tc = _pick_tile(T, tc_cap, 1)           # timesteps per grid step (chunked loop)
    return pl.pallas_call(
        _lstm_kernel,
        out_shape=jax.ShapeDtypeStruct((T, B, H), gates_x.dtype),
        grid_spec=pltpu.PrefetchScalarGridSpec(
            num_scalar_prefetch=0,
            grid=(T // tc,),
            in_specs=[
                pl.BlockSpec((tc, B, 4 * H), lambda t: (t, 0, 0)),
                pl.BlockSpec((H, 4 * H), lambda t: (0, 0)),
            ],
            out_specs=pl.BlockSpec((tc, B, H), lambda t: (t, 0, 0)),
            scratch_shapes=[pltpu.VMEM((B, H), jnp.float32),
                            pltpu.VMEM((B, H), jnp.float32)],
        ),
        compiler_params=pltpu.CompilerParams(
            dimension_semantics=("arbitrary",),     # recurrence => sequential grid
            vmem_limit_bytes=48 * 1024 * 1024,
        ),
    )(gates_x, w_hh)


# ---------------------------------- params -----------------------------------
def init_params(key, vocab_length, embedding_dim, hidden_dim, nlayers):
    keys = jax.random.split(key, 3 + 4 * nlayers)
    k = 1.0 / float(hidden_dim) ** 0.5
    embedding = jax.random.normal(keys[0], (vocab_length, embedding_dim), jnp.float32)
    lstm = []
    for l in range(nlayers):
        in_dim = embedding_dim if l == 0 else hidden_dim
        kw = keys[3 + 4 * l: 3 + 4 * l + 4]
        w_ih = jax.random.uniform(kw[0], (in_dim, 4 * hidden_dim), jnp.float32, -k, k)
        w_hh = jax.random.uniform(kw[1], (hidden_dim, 4 * hidden_dim), jnp.float32, -k, k)
        b_ih = jax.random.uniform(kw[2], (4 * hidden_dim,), jnp.float32, -k, k)
        b_hh = jax.random.uniform(kw[3], (4 * hidden_dim,), jnp.float32, -k, k)
        lstm.append(dict(w_ih=w_ih, w_hh=w_hh, b=b_ih + b_hh))  # bias folded once
    w_out = jax.random.uniform(keys[1], (hidden_dim, vocab_length), jnp.float32, -k, k)
    b_out = jax.random.uniform(keys[2], (vocab_length,), jnp.float32, -k, k)
    return dict(embedding=embedding, lstm=lstm, w_out=w_out, b_out=b_out)


# --------------------------------- forward ------------------------------------
def language_model_forward(params, tokens):
    """tokens: (T, B) int32 -> logits: (T, B, vocab)."""
    T, B = tokens.shape
    # Embedding lookup: table-sized random access, kept as a plain JAX gather.
    # TODO(synk): could be fused into the layer-0 input-projection GEMM via
    # scalar-prefetched token ids + pl.Element row gather.
    x = params["embedding"][tokens]                               # (T, B, E)
    for layer in params["lstm"]:                                  # dropout=None path
        e_in = x.shape[-1]
        # (1) one big GEMM for the input projection + bias (MXU saturating)
        gates_x = linear(x.reshape(T * B, e_in), layer["w_ih"], layer["b"])
        gates_x = gates_x.reshape(T, B, -1)                       # (T, B, 4H)
        # (2) sequential recurrence: only h @ w_hh on the critical path
        x = lstm_recurrence(gates_x, layer["w_hh"])               # (T, B, H)
    H = x.shape[-1]
    logits = linear(x.reshape(T * B, H), params["w_out"], params["b_out"])
    V = params["w_out"].shape[1]
    return logits.reshape(T, B, V)


# ---------------------------- pure-JAX reference -------------------------------
def reference_forward(params, tokens):
    x = params["embedding"][tokens]
    for layer in params["lstm"]:
        H = layer["w_hh"].shape[0]

        def step(carry, xt, layer=layer):
            h, c = carry
            gates = xt @ layer["w_ih"] + h @ layer["w_hh"] + layer["b"]
            i, f, g, o = jnp.split(gates, 4, axis=-1)
            c = jax.nn.sigmoid(f) * c + jax.nn.sigmoid(i) * jnp.tanh(g)
            h = jax.nn.sigmoid(o) * jnp.tanh(c)
            return (h, c), h

        B = x.shape[1]
        init = (jnp.zeros((B, H), jnp.float32), jnp.zeros((B, H), jnp.float32))
        _, x = jax.lax.scan(step, init, x)
    flat = x.reshape(-1, x.shape[-1])
    logits = flat @ params["w_out"] + params["b_out"]
    return logits.reshape(-1, tokens.shape[1], params["w_out"].shape[1])


# TODO(synk): generate() (greedy / top-k sampling loop) is host-side control flow
# and is not part of the required forward pass; not implemented as a kernel.

if __name__ == "__main__":
    # Small but TPU-friendly shapes: B multiple of 8 (sublane), E/H/V multiples
    # of 128 (lane) so gate slices and output stores are lane-aligned.
    vocab_length, embedding_dim, hidden_dim, nlayers = 256, 128, 128, 2
    T, B = 16, 8

    key = jax.random.PRNGKey(0)
    pkey, tkey = jax.random.split(key)
    params = init_params(pkey, vocab_length, embedding_dim, hidden_dim, nlayers)
    tokens = jax.random.randint(tkey, (T, B), 0, vocab_length, dtype=jnp.int32)

    out = language_model_forward(params, tokens)
    out = jax.block_until_ready(out)

    ref = reference_forward(params, tokens)
    assert out.shape == (T, B, vocab_length), out.shape
    assert jnp.allclose(out, ref, atol=1e-3, rtol=1e-3), "mismatch vs reference"
    print("KERNEL_OK")
</pallas_src>

<mosaic_0001>
module attributes {stable_mosaic.version = 11 : i64} {
  func.func @_linear_kernel(%arg0: i32, %arg1: i32, %arg2: i32, %arg3: memref<128x128xf32, #tpu.memory_space<vmem>>, %arg4: memref<128x512xf32, #tpu.memory_space<vmem>>, %arg5: memref<1x512xf32, #tpu.memory_space<vmem>>, %arg6: memref<128x512xf32, #tpu.memory_space<vmem>>, %arg7: memref<128x512xf32, #tpu.memory_space<vmem>>) attributes {dimension_semantics = [#tpu.dimension_semantics<parallel>, #tpu.dimension_semantics<parallel>, #tpu.dimension_semantics<arbitrary>], iteration_bounds = array<i64: 1, 1, 1>, scalar_prefetch = 0 : i64, scratch_operands = 1 : i64, tpu.core_type = #tpu.core_type<tc>, window_params = [{transform_indices = @transform_0, window_bounds = array<i64: 128, 128>}, {transform_indices = @transform_1, window_bounds = array<i64: 128, 512>}, {transform_indices = @transform_2, window_bounds = array<i64: 1, 512>}, {transform_indices = @transform_3, window_bounds = array<i64: 128, 512>}]} {
    %c0_i32 = arith.constant 0 : i32
    %0 = arith.cmpi eq, %arg2, %c0_i32 : i32
    %1 = arith.extui %0 : i1 to i32
    %c0_i32_0 = arith.constant 0 : i32
    %2 = arith.cmpi ne, %1, %c0_i32_0 : i32
    scf.if %2 {
      %cst_10 = arith.constant 0.000000e+00 : f32
      %12 = vector.broadcast %cst_10 : f32 to vector<128x512xf32>
      %c0_11 = arith.constant 0 : index
      %c0_12 = arith.constant 0 : index
      %13 = vector.load %arg7[%c0_11, %c0_12] : memref<128x512xf32, #tpu.memory_space<vmem>>, vector<128x512xf32>
      tpu.vector_store %arg7[%c0_11, %c0_12], %12 {strides = array<i32>} : memref<128x512xf32, #tpu.memory_space<vmem>>, vector<128x512xf32>,
    } else {
    }
    %c0 = arith.constant 0 : index
    %c0_1 = arith.constant 0 : index
    %3 = vector.load %arg7[%c0, %c0_1] : memref<128x512xf32, #tpu.memory_space<vmem>>, vector<128x512xf32>
    %c0_2 = arith.constant 0 : index
    %c0_3 = arith.constant 0 : index
    %4 = vector.load %arg3[%c0_2, %c0_3] : memref<128x128xf32, #tpu.memory_space<vmem>>, vector<128x128xf32>
    %c0_4 = arith.constant 0 : index
    %c0_5 = arith.constant 0 : index
    %5 = vector.load %arg4[%c0_4, %c0_5] : memref<128x512xf32, #tpu.memory_space<vmem>>, vector<128x512xf32>
    %cst = arith.constant dense<0.000000e+00> : vector<128x512xf32>
    %6 = tpu.matmul %4, %5, %cst {dimension_numbers = #tpu.dot_dimension_numbers<[1], [0], [0], [1], [0, 0, 1, 1], [], []>} : vector<128x128xf32>, vector<128x512xf32>, vector<128x512xf32> -> vector<128x512xf32>
    %7 = arith.addf %3, %6 : vector<128x512xf32>
    %c0_6 = arith.constant 0 : index
    %c0_7 = arith.constant 0 : index
    %8 = vector.load %arg7[%c0_6, %c0_7] : memref<128x512xf32, #tpu.memory_space<vmem>>, vector<128x512xf32>
    tpu.vector_store %arg7[%c0_6, %c0_7], %7 {strides = array<i32>} : memref<128x512xf32, #tpu.memory_space<vmem>>, vector<128x512xf32>,
    %c0_i32_8 = arith.constant 0 : i32
    %9 = arith.cmpi eq, %arg2, %c0_i32_8 : i32
    %10 = arith.extui %9 : i1 to i32
    %c0_i32_9 = arith.constant 0 : i32
    %11 = arith.cmpi ne, %10, %c0_i32_9 : i32
    scf.if %11 {
      %c0_10 = arith.constant 0 : index
      %c0_11 = arith.constant 0 : index
      %12 = vector.load %arg7[%c0_10, %c0_11] : memref<128x512xf32, #tpu.memory_space<vmem>>, vector<128x512xf32>
      %c0_12 = arith.constant 0 : index
      %c0_13 = arith.constant 0 : index
      %13 = vector.load %arg5[%c0_12, %c0_13] : memref<1x512xf32, #tpu.memory_space<vmem>>, vector<1x512xf32>
      %14 = vector.broadcast %13 : vector<1x512xf32> to vector<128x512xf32>
      %15 = arith.addf %12, %14 : vector<128x512xf32>
      %c0_14 = arith.constant 0 : index
      %c0_15 = arith.constant 0 : index
      %16 = vector.load %arg6[%c0_14, %c0_15] : memref<128x512xf32, #tpu.memory_space<vmem>>, vector<128x512xf32>
      tpu.vector_store %arg6[%c0_14, %c0_15], %15 {strides = array<i32>} : memref<128x512xf32, #tpu.memory_space<vmem>>, vector<128x512xf32>,
    } else {
    }
    return
  }
  func.func @transform_0(%arg0: i32, %arg1: i32, %arg2: i32) -> (i32, i32) {
    %c0_i32 = arith.constant 0 : i32
    return %arg0, %arg2 : i32, i32
  }
  func.func @transform_1(%arg0: i32, %arg1: i32, %arg2: i32) -> (i32, i32) {
    %c0_i32 = arith.constant 0 : i32
    return %arg2, %arg1 : i32, i32
  }
  func.func @transform_2(%arg0: i32, %arg1: i32, %arg2: i32) -> (i32, i32) {
    %c0_i32 = arith.constant 0 : i32
    %c0_i32_0 = arith.constant 0 : i32
    return %c0_i32, %arg1 : i32, i32
  }
  func.func @transform_3(%arg0: i32, %arg1: i32, %arg2: i32) -> (i32, i32) {
    %c0_i32 = arith.constant 0 : i32
    return %arg0, %arg1 : i32, i32
  }
}

</mosaic_0001>

<llo_original>
// kernel: tpu_custom_call.1
$region0: #{tpu_custom_call.1}
  #allocation0 [shape = 'u32[]', space=smem, size = 0x4, offset = 0x4, fixed_abs, tag = 'smem constant byte address 0x4 - core index']
  #allocation1 [shape = 'u32[144,128]{1,0:T(1,128)}', space=vmem, size = 0x12000, scoped, tag = 'internal scratch']
  #allocation2 [shape = 'f32[128,512]{1,0:T(8,128)}', space=vmem, size = 0x40000, scoped, tag = 'scratch operand']
  %s0 = inlined_call_operand.hbm [shape: f32[128,128], index: 0, kind: input, shape index: {}]
  %s1 = inlined_call_operand.hbm [shape: f32[128,512], index: 1, kind: input, shape index: {}]
  %s2 = inlined_call_operand.vmem [shape: f32[1,512], index: 2, kind: input, shape index: {}]
  %s3 = inlined_call_operand.hbm [shape: f32[128,512], index: 3, kind: output, shape index: {}]
  %s4 = sld [smem:[#allocation0]]
  $region38: #{tpu_custom_call.1} parent=0
    _
  %s6 = ssub.s32 1, %s4
  %s7 = scalar_select 0, %s6, %s4
  $region1: #{tpu_custom_call.1} parent=0
    #allocation3 [shape = 'u8[65536]{0}', space=vmem, size = 0x10000, scoped, tag = 'input window, operand 0, single buffered']
    #allocation4 [shape = 's32[1]{0}', space=sflag, size = 0x4, scoped, tag = 'scoped memory for tpu_custom_call.1']
    #allocation5 [shape = 's32[1]{0}', space=sflag, size = 0x4, scoped, tag = 'scoped memory for tpu_custom_call.1']
    #allocation6 [shape = 'u8[262144]{0}', space=vmem, size = 0x40000, scoped, tag = 'input window, operand 1, single buffered']
    #allocation7 [shape = 's32[1]{0}', space=sflag, size = 0x4, scoped, tag = 'scoped memory for tpu_custom_call.1']
    #allocation8 [shape = 'u8[262144]{0}', space=vmem, size = 0x40000, scoped, tag = 'output window, operand 0, single buffered']
    %8 = vsyncpa [#allocation4], 0
    %9 = vsyncpa [#allocation7], 0
    %10 = vsyncpa [#allocation5], 0
    // Predicated region
    $region2: #{tpu_custom_call.1} parent=1 // pred_check
      _
    $region3: #{tpu_custom_call.1} parent=1 // pred_check_branch
      %12 = sbr.rel (0) target = $region5
    $region4: #{tpu_custom_call.1} parent=1 // pred_region
      %s14 = ssub.s32 2048, 2048
      %15 = vsyncadd [#allocation4], %s14
      %s16 = sshll.u32 [#allocation3], 4
      %s17 = int_to_ptr.vmem [resolvable:$true] %s16
      %22 = dma.hbm_to_vmem [thread:$0]  %s0, 2048, %s17, [#allocation4], 128, 128, 8
    $region5: #{tpu_custom_call.1} parent=1 // pred_fallthru
      _
    // Predicated region
    $region6: #{tpu_custom_call.1} parent=1 // pred_check
      _
    $region7: #{tpu_custom_call.1} parent=1 // pred_check_branch
      %24 = sbr.rel (0) target = $region9
    $region8: #{tpu_custom_call.1} parent=1 // pred_region
      %s26 = ssub.s32 8192, 8192
      %27 = vsyncadd [#allocation7], %s26
      %s28 = sshll.u32 [#allocation6], 4
      %s29 = int_to_ptr.vmem [resolvable:$true] %s28
      %34 = dma.hbm_to_vmem [thread:$0]  %s1, 8192, %s29, [#allocation7], 512, 512, 32
    $region9: #{tpu_custom_call.1} parent=1 // pred_fallthru
      _
    // Predicated region
    $region10: #{tpu_custom_call.1} parent=1 // pred_check
      _
    $region11: #{tpu_custom_call.1} parent=1 // pred_check_branch
      %36 = sbr.rel (0) target = $region13
    $region12: #{tpu_custom_call.1} parent=1 // pred_region
      _
    $region13: #{tpu_custom_call.1} parent=1 // pred_fallthru
      _
    // Predicated region
    $region14: #{tpu_custom_call.1} parent=1 // pred_check
      _
    $region15: #{tpu_custom_call.1} parent=1 // pred_check_branch
      %38 = sbr.rel (0) target = $region17
    $region16: #{tpu_custom_call.1} parent=1 // pred_region
      %39 = dma.done [#allocation4], 2048
    $region17: #{tpu_custom_call.1} parent=1 // pred_fallthru
      _
    // Predicated region
    $region18: #{tpu_custom_call.1} parent=1 // pred_check
      _
    $region19: #{tpu_custom_call.1} parent=1 // pred_check_branch
      %41 = sbr.rel (0) target = $region21
    $region20: #{tpu_custom_call.1} parent=1 // pred_region
      %42 = dma.done [#allocation7], 8192
    $region21: #{tpu_custom_call.1} parent=1 // pred_fallthru
      _
    %p43 = scmp.eq.s32.totalorder 0, 0
    // Predicated region
    $region22: #{tpu_custom_call.1} parent=1 // pred_check
      %p44 = pneg %p43
    $region23: #{tpu_custom_call.1} parent=1 // pred_check_branch
      %46 = sbr.rel (%p44) target = $region25
    $region24: #{tpu_custom_call.1} parent=1 // pred_region
      %47 = vst [vmem:[#allocation2] sm:$0xff] 0.0
      %48 = vst [vmem:[#allocation2 + $0x8] sm:$0xff] 0.0
      %49 = vst [vmem:[#allocation2 + $0x10] sm:$0xff] 0.0
      %50 = vst [vmem:[#allocation2 + $0x18] sm:$0xff] 0.0
      %51 = vst [vmem:[#allocation2 + $0x20] sm:$0xff] 0.0
      %52 = vst [vmem:[#allocation2 + $0x28] sm:$0xff] 0.0
      %53 = vst [vmem:[#allocation2 + $0x30] sm:$0xff] 0.0
      %54 = vst [vmem:[#allocation2 + $0x38] sm:$0xff] 0.0
      %55 = vst [vmem:[#allocation2 + $0x40] sm:$0xff] 0.0
      %56 = vst [vmem:[#allocation2 + $0x48] sm:$0xff] 0.0
      %57 = vst [vmem:[#allocation2 + $0x50] sm:$0xff] 0.0
      %58 = vst [vmem:[#allocation2 + $0x58] sm:$0xff] 0.0
      %59 = vst [vmem:[#allocation2 + $0x60] sm:$0xff] 0.0
      %60 = vst [vmem:[#allocation2 + $0x68] sm:$0xff] 0.0
      %61 = vst [vmem:[#allocation2 + $0x70] sm:$0xff] 0.0
      %62 = vst [vmem:[#allocation2 + $0x78] sm:$0xff] 0.0
      %63 = vst [vmem:[#allocation2 + $0x80] sm:$0xff] 0.0
      %64 = vst [vmem:[#allocation2 + $0x88] sm:$0xff] 0.0
      %65 = vst [vmem:[#allocation2 + $0x90] sm:$0xff] 0.0
      %66 = vst [vmem:[#allocation2 + $0x98] sm:$0xff] 0.0
      %67 = vst [vmem:[#allocation2 + $0xa0] sm:$0xff] 0.0
      %68 = vst [vmem:[#allocation2 + $0xa8] sm:$0xff] 0.0
      %69 = vst [vmem:[#allocation2 + $0xb0] sm:$0xff] 0.0
      %70 = vst [vmem:[#allocation2 + $0xb8] sm:$0xff] 0.0
      %71 = vst [vmem:[#allocation2 + $0xc0] sm:$0xff] 0.0
      %72 = vst [vmem:[#allocation2 + $0xc8] sm:$0xff] 0.0
      %73 = vst [vmem:[#allocation2 + $0xd0] sm:$0xff] 0.0
      %74 = vst [vmem:[#allocation2 + $0xd8] sm:$0xff] 0.0
      %75 = vst [vmem:[#allocation2 + $0xe0] sm:$0xff] 0.0
      %76 = vst [vmem:[#allocation2 + $0xe8] sm:$0xff] 0.0
      %77 = vst [vmem:[#allocation2 + $0xf0] sm:$0xff] 0.0
      %78 = vst [vmem:[#allocation2 + $0xf8] sm:$0xff] 0.0
      %79 = vst [vmem:[#allocation2 + $0x100] sm:$0xff] 0.0
      %80 = vst [vmem:[#allocation2 + $0x108] sm:$0xff] 0.0
      %81 = vst [vmem:[#allocation2 + $0x110] sm:$0xff] 0.0
      %82 = vst [vmem:[#allocation2 + $0x118] sm:$0xff] 0.0
      %83 = vst [vmem:[#allocation2 + $0x120] sm:$0xff] 0.0
      %84 = vst [vmem:[#allocation2 + $0x128] sm:$0xff] 0.0
      %85 = vst [vmem:[#allocation2 + $0x130] sm:$0xff] 0.0
      %86 = vst [vmem:[#allocation2 + $0x138] sm:$0xff] 0.0
      %87 = vst [vmem:[#allocation2 + $0x140] sm:$0xff] 0.0
      %88 = vst [vmem:[#allocation2 + $0x148] sm:$0xff] 0.0
      %89 = vst [vmem:[#allocation2 + $0x150] sm:$0xff] 0.0
      %90 = vst [vmem:[#allocation2 + $0x158] sm:$0xff] 0.0
      %91 = vst [vmem:[#allocation2 + $0x160] sm:$0xff] 0.0
      %92 = vst [vmem:[#allocation2 + $0x168] sm:$0xff] 0.0
      %93 = vst [vmem:[#allocation2 + $0x170] sm:$0xff] 0.0
      %94 = vst [vmem:[#allocation2 + $0x178] sm:$0xff] 0.0
      %95 = vst [vmem:[#allocation2 + $0x180] sm:$0xff] 0.0
      %96 = vst [vmem:[#allocation2 + $0x188] sm:$0xff] 0.0
      %97 = vst [vmem:[#allocation2 + $0x190] sm:$0xff] 0.0
      %98 = vst [vmem:[#allocation2 + $0x198] sm:$0xff] 0.0
      %99 = vst [vmem:[#allocation2 + $0x1a0] sm:$0xff] 0.0
      %100 = vst [vmem:[#allocation2 + $0x1a8] sm:$0xff] 0.0
      %101 = vst [vmem:[#allocation2 + $0x1b0] sm:$0xff] 0.0
      %102 = vst [vmem:[#allocation2 + $0x1b8] sm:$0xff] 0.0
      %103 = vst [vmem:[#allocation2 + $0x1c0] sm:$0xff] 0.0
      %104 = vst [vmem:[#allocation2 + $0x1c8] sm:$0xff] 0.0
      %105 = vst [vmem:[#allocation2 + $0x1d0] sm:$0xff] 0.0
      %106 = vst [vmem:[#allocation2 + $0x1d8] sm:$0xff] 0.0
      %107 = vst [vmem:[#allocation2 + $0x1e0] sm:$0xff] 0.0
      %108 = vst [vmem:[#allocation2 + $0x1e8] sm:$0xff] 0.0
      %109 = vst [vmem:[#allocation2 + $0x1f0] sm:$0xff] 0.0
      %110 = vst [vmem:[#allocation2 + $0x1f8] sm:$0xff] 0.0
    $region25: #{tpu_custom_call.1} parent=1 // pred_fallthru
      _
    %v111 = vld [vmem:[#allocation2] sm:$0xff]
    %v112 = vld [vmem:[#allocation2 + $0x8] sm:$0xff]
    %v113 = vld [vmem:[#allocation2 + $0x10] sm:$0xff]
    %v114 = vld [vmem:[#allocation2 + $0x18] sm:$0xff]
    %v115 = vld [vmem:[#allocation2 + $0x20] sm:$0xff]
    %v116 = vld [vmem:[#allocation2 + $0x28] sm:$0xff]
    %v117 = vld [vmem:[#allocation2 + $0x30] sm:$0xff]
    %v118 = vld [vmem:[#allocation2 + $0x38] sm:$0xff]
    %v119 = vld [vmem:[#allocation2 + $0x40] sm:$0xff]
    %v120 = vld [vmem:[#allocation2 + $0x48] sm:$0xff]
    %v121 = vld [vmem:[#allocation2 + $0x50] sm:$0xff]
    %v122 = vld [vmem:[#allocation2 + $0x58] sm:$0xff]
    %v123 = vld [vmem:[#allocation2 + $0x60] sm:$0xff]
    %v124 = vld [vmem:[#allocation2 + $0x68] sm:$0xff]
    %v125 = vld [vmem:[#allocation2 + $0x70] sm:$0xff]
    %v126 = vld [vmem:[#allocation2 + $0x78] sm:$0xff]
    %v127 = vld [vmem:[#allocation2 + $0x80] sm:$0xff]
    %v128 = vld [vmem:[#allocation2 + $0x88] sm:$0xff]
    %v129 = vld [vmem:[#allocation2 + $0x90] sm:$0xff]
    %v130 = vld [vmem:[#allocation2 + $0x98] sm:$0xff]
    %v131 = vld [vmem:[#allocation2 + $0xa0] sm:$0xff]
    %v132 = vld [vmem:[#allocation2 + $0xa8] sm:$0xff]
    %v133 = vld [vmem:[#allocation2 + $0xb0] sm:$0xff]
    %v134 = vld [vmem:[#allocation2 + $0xb8] sm:$0xff]
    %v135 = vld [vmem:[#allocation2 + $0xc0] sm:$0xff]
    %v136 = vld [vmem:[#allocation2 + $0xc8] sm:$0xff]
    %v137 = vld [vmem:[#allocation2 + $0xd0] sm:$0xff]
    %v138 = vld [vmem:[#allocation2 + $0xd8] sm:$0xff]
    %v139 = vld [vmem:[#allocation2 + $0xe0] sm:$0xff]
    %v140 = vld [vmem:[#allocation2 + $0xe8] sm:$0xff]
    %v141 = vld [vmem:[#allocation2 + $0xf0] sm:$0xff]
    %v142 = vld [vmem:[#allocation2 + $0xf8] sm:$0xff]
    %v143 = vld [vmem:[#allocation2 + $0x100] sm:$0xff]
    %v144 = vld [vmem:[#allocation2 + $0x108] sm:$0xff]
    %v145 = vld [vmem:[#allocation2 + $0x110] sm:$0xff]
    %v146 = vld [vmem:[#allocation2 + $0x118] sm:$0xff]
    %v147 = vld [vmem:[#allocation2 + $0x120] sm:$0xff]
    %v148 = vld [vmem:[#allocation2 + $0x128] sm:$0xff]
    %v149 = vld [vmem:[#allocation2 + $0x130] sm:$0xff]
    %v150 = vld [vmem:[#allocation2 + $0x138] sm:$0xff]
    %v151 = vld [vmem:[#allocation2 + $0x140] sm:$0xff]
    %v152 = vld [vmem:[#allocation2 + $0x148] sm:$0xff]
    %v153 = vld [vmem:[#allocation2 + $0x150] sm:$0xff]
    %v154 = vld [vmem:[#allocation2 + $0x158] sm:$0xff]
    %v155 = vld [vmem:[#allocation2 + $0x160] sm:$0xff]
    %v156 = vld [vmem:[#allocation2 + $0x168] sm:$0xff]
    %v157 = vld [vmem:[#allocation2 + $0x170] sm:$0xff]
    %v158 = vld [vmem:[#allocation2 + $0x178] sm:$0xff]
    %v159 = vld [vmem:[#allocation2 + $0x180] sm:$0xff]
    %v160 = vld [vmem:[#allocation2 + $0x188] sm:$0xff]
    %v161 = vld [vmem:[#allocation2 + $0x190] sm:$0xff]
    %v162 = vld [vmem:[#allocation2 + $0x198] sm:$0xff]
    %v163 = vld [vmem:[#allocation2 + $0x1a0] sm:$0xff]
    %v164 = vld [vmem:[#allocation2 + $0x1a8] sm:$0xff]
    %v165 = vld [vmem:[#allocation2 + $0x1b0] sm:$0xff]
    %v166 = vld [vmem:[#allocation2 + $0x1b8] sm:$0xff]
    %v167 = vld [vmem:[#allocation2 + $0x1c0] sm:$0xff]
    %v168 = vld [vmem:[#allocation2 + $0x1c8] sm:$0xff]
    %v169 = vld [vmem:[#allocation2 + $0x1d0] sm:$0xff]
    %v170 = vld [vmem:[#allocation2 + $0x1d8] sm:$0xff]
    %v171 = vld [vmem:[#allocation2 + $0x1e0] sm:$0xff]
    %v172 = vld [vmem:[#allocation2 + $0x1e8] sm:$0xff]
    %v173 = vld [vmem:[#allocation2 + $0x1f0] sm:$0xff]
    %v174 = vld [vmem:[#allocation2 + $0x1f8] sm:$0xff]
    %v175 = vld [vmem:[#allocation3] sm:$0xff]
    %v176 = vld [vmem:[#allocation3 + $0x8] sm:$0xff]
    %v177 = vld [vmem:[#allocation3 + $0x10] sm:$0xff]
    %v178 = vld [vmem:[#allocation3 + $0x18] sm:$0xff]
    %v179 = vld [vmem:[#allocation3 + $0x20] sm:$0xff]
    %v180 = vld [vmem:[#allocation3 + $0x28] sm:$0xff]
    %v181 = vld [vmem:[#allocation3 + $0x30] sm:$0xff]
    %v182 = vld [vmem:[#allocation3 + $0x38] sm:$0xff]
    %v183 = vld [vmem:[#allocation3 + $0x40] sm:$0xff]
    %v184 = vld [vmem:[#allocation3 + $0x48] sm:$0xff]
    %v185 = vld [vmem:[#allocation3 + $0x50] sm:$0xff]
    %v186 = vld [vmem:[#allocation3 + $0x58] sm:$0xff]
    %v187 = vld [vmem:[#allocation3 + $0x60] sm:$0xff]
    %v188 = vld [vmem:[#allocation3 + $0x68] sm:$0xff]
    %v189 = vld [vmem:[#allocation3 + $0x70] sm:$0xff]
    %v190 = vld [vmem:[#allocation3 + $0x78] sm:$0xff]
    %v191 = vld [vmem:[#allocation6] sm:$0xff]
    %v192 = vld [vmem:[#allocation6 + $0x8] sm:$0xff]
    %v193 = vld [vmem:[#allocation6 + $0x10] sm:$0xff]
    %v194 = vld [vmem:[#allocation6 + $0x18] sm:$0xff]
    %v195 = vld [vmem:[#allocation6 + $0x20] sm:$0xff]
    %v196 = vld [vmem:[#allocation6 + $0x28] sm:$0xff]
    %v197 = vld [vmem:[#allocation6 + $0x30] sm:$0xff]
    %v198 = vld [vmem:[#allocation6 + $0x38] sm:$0xff]
    %v199 = vld [vmem:[#allocation6 + $0x40] sm:$0xff]
    %v200 = vld [vmem:[#allocation6 + $0x48] sm:$0xff]
    %v201 = vld [vmem:[#allocation6 + $0x50] sm:$0xff]
    %v202 = vld [vmem:[#allocation6 + $0x58] sm:$0xff]
    %v203 = vld [vmem:[#allocation6 + $0x60] sm:$0xff]
    %v204 = vld [vmem:[#allocation6 + $0x68] sm:$0xff]
    %v205 = vld [vmem:[#allocation6 + $0x70] sm:$0xff]
    %v206 = vld [vmem:[#allocation6 + $0x78] sm:$0xff]
    %v207 = vld [vmem:[#allocation6 + $0x80] sm:$0xff]
    %v208 = vld [vmem:[#allocation6 + $0x88] sm:$0xff]
    %v209 = vld [vmem:[#allocation6 + $0x90] sm:$0xff]
    %v210 = vld [vmem:[#allocation6 + $0x98] sm:$0xff]
    %v211 = vld [vmem:[#allocation6 + $0xa0] sm:$0xff]
    %v212 = vld [vmem:[#allocation6 + $0xa8] sm:$0xff]
    %v213 = vld [vmem:[#allocation6 + $0xb0] sm:$0xff]
    %v214 = vld [vmem:[#allocation6 + $0xb8] sm:$0xff]
    %v215 = vld [vmem:[#allocation6 + $0xc0] sm:$0xff]
    %v216 = vld [vmem:[#allocation6 + $0xc8] sm:$0xff]
    %v217 = vld [vmem:[#allocation6 + $0xd0] sm:$0xff]
    %v218 = vld [vmem:[#allocation6 + $0xd8] sm:$0xff]
    %v219 = vld [vmem:[#allocation6 + $0xe0] sm:$0xff]
    %v220 = vld [vmem:[#allocation6 + $0xe8] sm:$0xff]
    %v221 = vld [vmem:[#allocation6 + $0xf0] sm:$0xff]
    %v222 = vld [vmem:[#allocation6 + $0xf8] sm:$0xff]
    %v223 = vld [vmem:[#allocation6 + $0x100] sm:$0xff]
    %v224 = vld [vmem:[#allocation6 + $0x108] sm:$0xff]
    %v225 = vld [vmem:[#allocation6 + $0x110] sm:$0xff]
    %v226 = vld [vmem:[#allocation6 + $0x118] sm:$0xff]
    %v227 = vld [vmem:[#allocation6 + $0x120] sm:$0xff]
    %v228 = vld [vmem:[#allocation6 + $0x128] sm:$0xff]
    %v229 = vld [vmem:[#allocation6 + $0x130] sm:$0xff]
    %v230 = vld [vmem:[#allocation6 + $0x138] sm:$0xff]
    %v231 = vld [vmem:[#allocation6 + $0x140] sm:$0xff]
    %v232 = vld [vmem:[#allocation6 + $0x148] sm:$0xff]
    %v233 = vld [vmem:[#allocation6 + $0x150] sm:$0xff]
    %v234 = vld [vmem:[#allocation6 + $0x158] sm:$0xff]
    %v235 = vld [vmem:[#allocation6 + $0x160] sm:$0xff]
    %v236 = vld [vmem:[#allocation6 + $0x168] sm:$0xff]
    %v237 = vld [vmem:[#allocation6 + $0x170] sm:$0xff]
    %v238 = vld [vmem:[#allocation6 + $0x178] sm:$0xff]
    %v239 = vld [vmem:[#allocation6 + $0x180] sm:$0xff]
    %v240 = vld [vmem:[#allocation6 + $0x188] sm:$0xff]
    %v241 = vld [vmem:[#allocation6 + $0x190] sm:$0xff]
    %v242 = vld [vmem:[#allocation6 + $0x198] sm:$0xff]
    %v243 = vld [vmem:[#allocation6 + $0x1a0] sm:$0xff]
    %v244 = vld [vmem:[#allocation6 + $0x1a8] sm:$0xff]
    %v245 = vld [vmem:[#allocation6 + $0x1b0] sm:$0xff]
    %v246 = vld [vmem:[#allocation6 + $0x1b8] sm:$0xff]
    %v247 = vld [vmem:[#allocation6 + $0x1c0] sm:$0xff]
    %v248 = vld [vmem:[#allocation6 + $0x1c8] sm:$0xff]
    %v249 = vld [vmem:[#allocation6 + $0x1d0] sm:$0xff]
    %v250 = vld [vmem:[#allocation6 + $0x1d8] sm:$0xff]
    %v251 = vld [vmem:[#allocation6 + $0x1e0] sm:$0xff]
    %v252 = vld [vmem:[#allocation6 + $0x1e8] sm:$0xff]
    %v253 = vld [vmem:[#allocation6 + $0x1f0] sm:$0xff]
    %v254 = vld [vmem:[#allocation6 + $0x1f8] sm:$0xff]
    %255 = vmatprep.subr.mxu0 %v192
    %256 = vmatpush1.msra.mxu0 %v191
    %257 = vmatprep.subr.mxu0 %v196
    %258 = vmatpush1.msra.mxu0 %v195
    %259 = vmatprep.subr.mxu0 %v200
    %260 = vmatpush1.msra.mxu0 %v199
    %261 = vmatprep.subr.mxu0 %v204
    %262 = vmatpush1.msra.mxu0 %v203
    %263 = vmatprep.subr.mxu0 %v208
    %264 = vmatpush1.msra.mxu0 %v207
    %265 = vmatprep.subr.mxu0 %v212
    %266 = vmatpush1.msra.mxu0 %v211
    %267 = vmatprep.subr.mxu0 %v216
    %268 = vmatpush1.msra.mxu0 %v215
    %269 = vmatprep.subr.mxu0 %v220
    %270 = vmatpush1.msra.mxu0 %v219
    %271 = vmatprep.subr.mxu0 %v224
    %272 = vmatpush1.msra.mxu0 %v223
    %273 = vmatprep.subr.mxu0 %v228
    %274 = vmatpush1.msra.mxu0 %v227
    %275 = vmatprep.subr.mxu0 %v232
    %276 = vmatpush1.msra.mxu0 %v231
    %277 = vmatprep.subr.mxu0 %v236
    %278 = vmatpush1.msra.mxu0 %v235
    %279 = vmatprep.subr.mxu0 %v240
    %280 = vmatpush1.msra.mxu0 %v239
    %281 = vmatprep.subr.mxu0 %v244
    %282 = vmatpush1.msra.mxu0 %v243
    %283 = vmatprep.subr.mxu0 %v248
    %284 = vmatpush1.msra.mxu0 %v247
    %285 = vmatprep.subr.mxu0 %v252
    %286 = vmatpush1.msra.mxu0 %v251
    %287 = vmatprep.subr.mxu0 0.0
    %288 = vmatpush1.msra.mxu0 0.0
    %289 = vmatprep.subr.mxu0 0.0
    %290 = vmatpush1.msra.mxu0 0.0
    %291 = vmatprep.subr.mxu0 0.0
    %292 = vmatpush1.msra.mxu0 0.0
    %293 = vmatprep.subr.mxu0 0.0
    %294 = vmatpush1.msra.mxu0 0.0
    %295 = vmatprep.subr.mxu0 0.0
    %296 = vmatpush1.msra.mxu0 0.0
    %297 = vmatprep.subr.mxu0 0.0
    %298 = vmatpush1.msra.mxu0 0.0
    %299 = vmatprep.subr.mxu0 0.0
    %300 = vmatpush1.msra.mxu0 0.0
    %301 = vmatprep.subr.mxu0 0.0
    %302 = vmatpush1.msra.mxu0 0.0
    %303 = vmatprep.subr.mxu0 0.0
    %304 = vmatpush1.msra.mxu0 0.0
    %305 = vmatprep.subr.mxu0 0.0
    %306 = vmatpush1.msra.mxu0 0.0
    %307 = vmatprep.subr.mxu0 0.0
    %308 = vmatpush1.msra.mxu0 0.0
    %309 = vmatprep.subr.mxu0 0.0
    %310 = vmatpush1.msra.mxu0 0.0
    %311 = vmatprep.subr.mxu0 0.0
    %312 = vmatpush1.msra.mxu0 0.0
    %313 = vmatprep.subr.mxu0 0.0
    %314 = vmatpush1.msra.mxu0 0.0
    %315 = vmatprep.subr.mxu0 0.0
    %316 = vmatpush1.msra.mxu0 0.0
    %317 = vmatprep.subr.mxu0 0.0
    %318 = vmatpush1.msra.mxu0 0.0
    %319 = vmatprep.mubr.f32.mxu0 0.0
    %320 = vmatmul.mubr.f32.gmra.mrb[0].mxu0 %v175
    %v321 = vpop.f32.mrb[0].mxu0
    %v322 = vadd.f32 0.0, %v321
    %v323 = vpop.f32.mrb[0].mxu0
    %v324 = vadd.f32 0.0, %v323
    %325 = vmatprep.mubr.f32.mxu0 0.0
    %326 = vmatmul.mubr.f32.gmra.mrb[0].mxu0 %v176
    %v327 = vpop.f32.mrb[0].mxu0
    %v328 = vadd.f32 0.0, %v327
    %v329 = vpop.f32.mrb[0].mxu0
    %v330 = vadd.f32 0.0, %v329
    %331 = vmatprep.mubr.f32.mxu0 0.0
    %332 = vmatmul.mubr.f32.gmra.mrb[0].mxu0 %v177
    %v333 = vpop.f32.mrb[0].mxu0
    %v334 = vadd.f32 0.0, %v333
    %v335 = vpop.f32.mrb[0].mxu0
    %v336 = vadd.f32 0.0, %v335
    %337 = vmatprep.mubr.f32.mxu0 0.0
    %338 = vmatmul.mubr.f32.gmra.mrb[0].mxu0 %v178
    %v339 = vpop.f32.mrb[0].mxu0
    %v340 = vadd.f32 0.0, %v339
    %v341 = vpop.f32.mrb[0].mxu0
    %v342 = vadd.f32 0.0, %v341
    %343 = vmatprep.mubr.f32.mxu0 0.0
    %344 = vmatmul.mubr.f32.gmra.mrb[0].mxu0 %v179
    %v345 = vpop.f32.mrb[0].mxu0
    %v346 = vadd.f32 0.0, %v345
    %v347 = vpop.f32.mrb[0].mxu0
    %v348 = vadd.f32 0.0, %v347
    %349 = vmatprep.mubr.f32.mxu0 0.0
    %350 = vmatmul.mubr.f32.gmra.mrb[0].mxu0 %v180
    %v351 = vpop.f32.mrb[0].mxu0
    %v352 = vadd.f32 0.0, %v351
    %v353 = vpop.f32.mrb[0].mxu0
    %v354 = vadd.f32 0.0, %v353
    %355 = vmatprep.mubr.f32.mxu0 0.0
    %356 = vmatmul.mubr.f32.gmra.mrb[0].mxu0 %v181
    %v357 = vpop.f32.mrb[0].mxu0
    %v358 = vadd.f32 0.0, %v357
    %v359 = vpop.f32.mrb[0].mxu0
    %v360 = vadd.f32 0.0, %v359
    %361 = vmatprep.mubr.f32.mxu0 0.0
    %362 = vmatmul.mubr.f32.gmra.mrb[0].mxu0 %v182
    %v363 = vpop.f32.mrb[0].mxu0
    %v364 = vadd.f32 0.0, %v363
    %v365 = vpop.f32.mrb[0].mxu0
    %v366 = vadd.f32 0.0, %v365
    %367 = vmatprep.mubr.f32.mxu0 0.0
    %368 = vmatmul.mubr.f32.gmra.mrb[0].mxu0 %v183
    %v369 = vpop.f32.mrb[0].mxu0
    %v370 = vadd.f32 0.0, %v369
    %v371 = vpop.f32.mrb[0].mxu0
    %v372 = vadd.f32 0.0, %v371
    %373 = vmatprep.mubr.f32.mxu0 0.0
    %374 = vmatmul.mubr.f32.gmra.mrb[0].mxu0 %v184
    %v375 = vpop.f32.mrb[0].mxu0
    %v376 = vadd.f32 0.0, %v375
    %v377 = vpop.f32.mrb[0].mxu0
    %v378 = vadd.f32 0.0, %v377
    %379 = vmatprep.mubr.f32.mxu0 0.0
    %380 = vmatmul.mubr.f32.gmra.mrb[0].mxu0 %v185
    %v381 = vpop.f32.mrb[0].mxu0
    %v382 = vadd.f32 0.0, %v381
    %v383 = vpop.f32.mrb[0].mxu0
    %v384 = vadd.f32 0.0, %v383
    %385 = vmatprep.mubr.f32.mxu0 0.0
    %386 = vmatmul.mubr.f32.gmra.mrb[0].mxu0 %v186
    %v387 = vpop.f32.mrb[0].mxu0
    %v388 = vadd.f32 0.0, %v387
    %v389 = vpop.f32.mrb[0].mxu0
    %v390 = vadd.f32 0.0, %v389
    %391 = vmatprep.mubr.f32.mxu0 0.0
    %392 = vmatmul.mubr.f32.gmra.mrb[0].mxu0 %v187
    %v393 = vpop.f32.mrb[0].mxu0
    %v394 = vadd.f32 0.0, %v393
    %v395 = vpop.f32.mrb[0].mxu0
    %v396 = vadd.f32 0.0, %v395
    %397 = vmatprep.mubr.f32.mxu0 0.0
    %398 = vmatmul.mubr.f32.gmra.mrb[0].mxu0 %v188
    %v399 = vpop.f32.mrb[0].mxu0
    %v400 = vadd.f32 0.0, %v399
    %v401 = vpop.f32.mrb[0].mxu0
    %v402 = vadd.f32 0.0, %v401
    %403 = vmatprep.mubr.f32.mxu0 0.0
    %404 = vmatmul.mubr.f32.gmra.mrb[0].mxu0 %v189
    %v405 = vpop.f32.mrb[0].mxu0
    %v406 = vadd.f32 0.0, %v405
    %v407 = vpop.f32.mrb[0].mxu0
    %v408 = vadd.f32 0.0, %v407
    %409 = vmatprep.mubr.f32.mxu0 0.0
    %410 = vmatmul.mubr.f32.gmra.mrb[0].mxu0 %v190
    %v411 = vpop.f32.mrb[0].mxu0
    %v412 = vadd.f32 0.0, %v411
    %v413 = vpop.f32.mrb[0].mxu0
    %v414 = vadd.f32 0.0, %v413
    %415 = vdwg.mxu0
    %416 = vmatprep.subr.mxu0 %v194
    %417 = vmatpush1.msra.mxu0 %v193
    %418 = vmatprep.subr.mxu0 %v198
    %419 = vmatpush1.msra.mxu0 %v197
    %420 = vmatprep.subr.mxu0 %v202
    %421 = vmatpush1.msra.mxu0 %v201
    %422 = vmatprep.subr.mxu0 %v206
    %423 = vmatpush1.msra.mxu0 %v205
    %424 = vmatprep.subr.mxu0 %v210
    %425 = vmatpush1.msra.mxu0 %v209
    %426 = vmatprep.subr.mxu0 %v214
    %427 = vmatpush1.msra.mxu0 %v213
    %428 = vmatprep.subr.mxu0 %v218
    %429 = vmatpush1.msra.mxu0 %v217
    %430 = vmatprep.subr.mxu0 %v222
    %431 = vmatpush1.msra.mxu0 %v221
    %432 = vmatprep.subr.mxu0 %v226
    %433 = vmatpush1.msra.mxu0 %v225
    %434 = vmatprep.subr.mxu0 %v230
    %435 = vmatpush1.msra.mxu0 %v229
    %436 = vmatprep.subr.mxu0 %v234
    %437 = vmatpush1.msra.mxu0 %v233
    %438 = vmatprep.subr.mxu0 %v238
    %439 = vmatpush1.msra.mxu0 %v237
    %440 = vmatprep.subr.mxu0 %v242
    %441 = vmatpush1.msra.mxu0 %v241
    %442 = vmatprep.subr.mxu0 %v246
    %443 = vmatpush1.msra.mxu0 %v245
    %444 = vmatprep.subr.mxu0 %v250
    %445 = vmatpush1.msra.mxu0 %v249
    %446 = vmatprep.subr.mxu0 %v254
    %447 = vmatpush1.msra.mxu0 %v253
    %448 = vmatprep.subr.mxu0 0.0
    %449 = vmatpush1.msra.mxu0 0.0
    %450 = vmatprep.subr.mxu0 0.0
    %451 = vmatpush1.msra.mxu0 0.0
    %452 = vmatprep.subr.mxu0 0.0
    %453 = vmatpush1.msra.mxu0 0.0
    %454 = vmatprep.subr.mxu0 0.0
    %455 = vmatpush1.msra.mxu0 0.0
    %456 = vmatprep.subr.mxu0 0.0
    %457 = vmatpush1.msra.mxu0 0.0
    %458 = vmatprep.subr.mxu0 0.0
    %459 = vmatpush1.msra.mxu0 0.0
    %460 = vmatprep.subr.mxu0 0.0
    %461 = vmatpush1.msra.mxu0 0.0
    %462 = vmatprep.subr.mxu0 0.0
    %463 = vmatpush1.msra.mxu0 0.0
    %464 = vmatprep.subr.mxu0 0.0
    %465 = vmatpush1.msra.mxu0 0.0
    %466 = vmatprep.subr.mxu0 0.0
    %467 = vmatpush1.msra.mxu0 0.0
    %468 = vmatprep.subr.mxu0 0.0
    %469 = vmatpush1.msra.mxu0 0.0
    %470 = vmatprep.subr.mxu0 0.0
    %471 = vmatpush1.msra.mxu0 0.0
    %472 = vmatprep.subr.mxu0 0.0
    %473 = vmatpush1.msra.mxu0 0.0
    %474 = vmatprep.subr.mxu0 0.0
    %475 = vmatpush1.msra.mxu0 0.0
    %476 = vmatprep.subr.mxu0 0.0
    %477 = vmatpush1.msra.mxu0 0.0
    %478 = vmatprep.subr.mxu0 0.0
    %479 = vmatpush1.msra.mxu0 0.0
    %480 = vmatprep.mubr.f32.mxu0 0.0
    %481 = vmatmul.mubr.f32.gmra.mrb[0].mxu0 %v175
    %v482 = vpop.f32.mrb[0].mxu0
    %v483 = vadd.f32 0.0, %v482
    %v484 = vpop.f32.mrb[0].mxu0
    %v485 = vadd.f32 0.0, %v484
    %486 = vmatprep.mubr.f32.mxu0 0.0
    %487 = vmatmul.mubr.f32.gmra.mrb[0].mxu0 %v176
    %v488 = vpop.f32.mrb[0].mxu0
    %v489 = vadd.f32 0.0, %v488
    %v490 = vpop.f32.mrb[0].mxu0
    %v491 = vadd.f32 0.0, %v490
    %492 = vmatprep.mubr.f32.mxu0 0.0
    %493 = vmatmul.mubr.f32.gmra.mrb[0].mxu0 %v177
    %v494 = vpop.f32.mrb[0].mxu0
    %v495 = vadd.f32 0.0, %v494
    %v496 = vpop.f32.mrb[0].mxu0
    %v497 = vadd.f32 0.0, %v496
    %498 = vmatprep.mubr.f32.mxu0 0.0
    %499 = vmatmul.mubr.f32.gmra.mrb[0].mxu0 %v178
    %v500 = vpop.f32.mrb[0].mxu0
    %v501 = vadd.f32 0.0, %v500
    %v502 = vpop.f32.mrb[0].mxu0
    %v503 = vadd.f32 0.0, %v502
    %504 = vmatprep.mubr.f32.mxu0 0.0
    %505 = vmatmul.mubr.f32.gmra.mrb[0].mxu0 %v179
    %v506 = vpop.f32.mrb[0].mxu0
    %v507 = vadd.f32 0.0, %v506
    %v508 = vpop.f32.mrb[0].mxu0
    %v509 = vadd.f32 0.0, %v508
    %510 = vmatprep.mubr.f32.mxu0 0.0
    %511 = vmatmul.mubr.f32.gmra.mrb[0].mxu0 %v180
    %v512 = vpop.f32.mrb[0].mxu0
    %v513 = vadd.f32 0.0, %v512
    %v514 = vpop.f32.mrb[0].mxu0
    %v515 = vadd.f32 0.0, %v514
    %516 = vmatprep.mubr.f32.mxu0 0.0
    %517 = vmatmul.mubr.f32.gmra.mrb[0].mxu0 %v181
    %v518 = vpop.f32.mrb[0].mxu0
    %v519 = vadd.f32 0.0, %v518
    %v520 = vpop.f32.mrb[0].mxu0
    %v521 = vadd.f32 0.0, %v520
    %522 = vmatprep.mubr.f32.mxu0 0.0
    %523 = vmatmul.mubr.f32.gmra.mrb[0].mxu0 %v182
    %v524 = vpop.f32.mrb[0].mxu0
    %v525 = vadd.f32 0.0, %v524
    %v526 = vpop.f32.mrb[0].mxu0
    %v527 = vadd.f32 0.0, %v526
    %528 = vmatprep.mubr.f32.mxu0 0.0
    %529 = vmatmul.mubr.f32.gmra.mrb[0].mxu0 %v183
    %v530 = vpop.f32.mrb[0].mxu0
    %v531 = vadd.f32 0.0, %v530
    %v532 = vpop.f32.mrb[0].mxu0
    %v533 = vadd.f32 0.0, %v532
    %534 = vmatprep.mubr.f32.mxu0 0.0
    %535 = vmatmul.mubr.f32.gmra.mrb[0].mxu0 %v184
    %v536 = vpop.f32.mrb[0].mxu0
    %v537 = vadd.f32 0.0, %v536
    %v538 = vpop.f32.mrb[0].mxu0
    %v539 = vadd.f32 0.0, %v538
    %540 = vmatprep.mubr.f32.mxu0 0.0
    %541 = vmatmul.mubr.f32.gmra.mrb[0].mxu0 %v185
    %v542 = vpop.f32.mrb[0].mxu0
    %v543 = vadd.f32 0.0, %v542
    %v544 = vpop.f32.mrb[0].mxu0
    %v545 = vadd.f32 0.0, %v544
    %546 = vmatprep.mubr.f32.mxu0 0.0
    %547 = vmatmul.mubr.f32.gmra.mrb[0].mxu0 %v186
    %v548 = vpop.f32.mrb[0].mxu0
    %v549 = vadd.f32 0.0, %v548
    %v550 = vpop.f32.mrb[0].mxu0
    %v551 = vadd.f32 0.0, %v550
    %552 = vmatprep.mubr.f32.mxu0 0.0
    %553 = vmatmul.mubr.f32.gmra.mrb[0].mxu0 %v187
    %v554 = vpop.f32.mrb[0].mxu0
    %v555 = vadd.f32 0.0, %v554
    %v556 = vpop.f32.mrb[0].mxu0
    %v557 = vadd.f32 0.0, %v556
    %558 = vmatprep.mubr.f32.mxu0 0.0
    %559 = vmatmul.mubr.f32.gmra.mrb[0].mxu0 %v188
    %v560 = vpop.f32.mrb[0].mxu0
    %v561 = vadd.f32 0.0, %v560
    %v562 = vpop.f32.mrb[0].mxu0
    %v563 = vadd.f32 0.0, %v562
    %564 = vmatprep.mubr.f32.mxu0 0.0
    %565 = vmatmul.mubr.f32.gmra.mrb[0].mxu0 %v189
    %v566 = vpop.f32.mrb[0].mxu0
    %v567 = vadd.f32 0.0, %v566
    %v568 = vpop.f32.mrb[0].mxu0
    %v569 = vadd.f32 0.0, %v568
    %570 = vmatprep.mubr.f32.mxu0 0.0
    %571 = vmatmul.mubr.f32.gmra.mrb[0].mxu0 %v190
    %v572 = vpop.f32.mrb[0].mxu0
    %v573 = vadd.f32 0.0, %v572
    %v574 = vpop.f32.mrb[0].mxu0
    %v575 = vadd.f32 0.0, %v574
    %576 = vdwg.mxu0
    %v577 = vadd.f32 %v111, %v322
    %v578 = vadd.f32 %v112, %v324
    %v579 = vadd.f32 %v113, %v483
    %v580 = vadd.f32 %v114, %v485
    %v581 = vadd.f32 %v115, %v328
    %v582 = vadd.f32 %v116, %v330
    %v583 = vadd.f32 %v117, %v489
    %v584 = vadd.f32 %v118, %v491
    %v585 = vadd.f32 %v119, %v334
    %v586 = vadd.f32 %v120, %v336
    %v587 = vadd.f32 %v121, %v495
    %v588 = vadd.f32 %v122, %v497
    %v589 = vadd.f32 %v123, %v340
    %v590 = vadd.f32 %v124, %v342
    %v591 = vadd.f32 %v125, %v501
    %v592 = vadd.f32 %v126, %v503
    %v593 = vadd.f32 %v127, %v346
    %v594 = vadd.f32 %v128, %v348
    %v595 = vadd.f32 %v129, %v507
    %v596 = vadd.f32 %v130, %v509
    %v597 = vadd.f32 %v131, %v352
    %v598 = vadd.f32 %v132, %v354
    %v599 = vadd.f32 %v133, %v513
    %v600 = vadd.f32 %v134, %v515
    %v601 = vadd.f32 %v135, %v358
    %v602 = vadd.f32 %v136, %v360
    %v603 = vadd.f32 %v137, %v519
    %v604 = vadd.f32 %v138, %v521
    %v605 = vadd.f32 %v139, %v364
    %v606 = vadd.f32 %v140, %v366
    %v607 = vadd.f32 %v141, %v525
    %v608 = vadd.f32 %v142, %v527
    %v609 = vadd.f32 %v143, %v370
    %v610 = vadd.f32 %v144, %v372
    %v611 = vadd.f32 %v145, %v531
    %v612 = vadd.f32 %v146, %v533
    %v613 = vadd.f32 %v147, %v376
    %v614 = vadd.f32 %v148, %v378
    %v615 = vadd.f32 %v149, %v537
    %v616 = vadd.f32 %v150, %v539
    %v617 = vadd.f32 %v151, %v382
    %v618 = vadd.f32 %v152, %v384
    %v619 = vadd.f32 %v153, %v543
    %v620 = vadd.f32 %v154, %v545
    %v621 = vadd.f32 %v155, %v388
    %v622 = vadd.f32 %v156, %v390
    %v623 = vadd.f32 %v157, %v549
    %v624 = vadd.f32 %v158, %v551
    %v625 = vadd.f32 %v159, %v394
    %v626 = vadd.f32 %v160, %v396
    %v627 = vadd.f32 %v161, %v555
    %v628 = vadd.f32 %v162, %v557
    %v629 = vadd.f32 %v163, %v400
    %v630 = vadd.f32 %v164, %v402
    %v631 = vadd.f32 %v165, %v561
    %v632 = vadd.f32 %v166, %v563
    %v633 = vadd.f32 %v167, %v406
    %v634 = vadd.f32 %v168, %v408
    %v635 = vadd.f32 %v169, %v567
    %v636 = vadd.f32 %v170, %v569
    %v637 = vadd.f32 %v171, %v412
    %v638 = vadd.f32 %v172, %v414
    %v639 = vadd.f32 %v173, %v573
    %v640 = vadd.f32 %v174, %v575
    %641 = vst [vmem:[#allocation2] sm:$0xff] %v577
    %642 = vst [vmem:[#allocation2 + $0x8] sm:$0xff] %v578
    %643 = vst [vmem:[#allocation2 + $0x10] sm:$0xff] %v579
    %644 = vst [vmem:[#allocation2 + $0x18] sm:$0xff] %v580
    %645 = vst [vmem:[#allocation2 + $0x20] sm:$0xff] %v581
    %646 = vst [vmem:[#allocation2 + $0x28] sm:$0xff] %v582
    %647 = vst [vmem:[#allocation2 + $0x30] sm:$0xff] %v583
    %648 = vst [vmem:[#allocation2 + $0x38] sm:$0xff] %v584
    %649 = vst [vmem:[#allocation2 + $0x40] sm:$0xff] %v585
    %650 = vst [vmem:[#allocation2 + $0x48] sm:$0xff] %v586
    %651 = vst [vmem:[#allocation2 + $0x50] sm:$0xff] %v587
    %652 = vst [vmem:[#allocation2 + $0x58] sm:$0xff] %v588
    %653 = vst [vmem:[#allocation2 + $0x60] sm:$0xff] %v589
    %654 = vst [vmem:[#allocation2 + $0x68] sm:$0xff] %v590
    %655 = vst [vmem:[#allocation2 + $0x70] sm:$0xff] %v591
    %656 = vst [vmem:[#allocation2 + $0x78] sm:$0xff] %v592
    %657 = vst [vmem:[#allocation2 + $0x80] sm:$0xff] %v593
    %658 = vst [vmem:[#allocation2 + $0x88] sm:$0xff] %v594
    %659 = vst [vmem:[#allocation2 + $0x90] sm:$0xff] %v595
    %660 = vst [vmem:[#allocation2 + $0x98] sm:$0xff] %v596
    %661 = vst [vmem:[#allocation2 + $0xa0] sm:$0xff] %v597
    %662 = vst [vmem:[#allocation2 + $0xa8] sm:$0xff] %v598
    %663 = vst [vmem:[#allocation2 + $0xb0] sm:$0xff] %v599
    %664 = vst [vmem:[#allocation2 + $0xb8] sm:$0xff] %v600
    %665 = vst [vmem:[#allocation2 + $0xc0] sm:$0xff] %v601
    %666 = vst [vmem:[#allocation2 + $0xc8] sm:$0xff] %v602
    %667 = vst [vmem:[#allocation2 + $0xd0] sm:$0xff] %v603
    %668 = vst [vmem:[#allocation2 + $0xd8] sm:$0xff] %v604
    %669 = vst [vmem:[#allocation2 + $0xe0] sm:$0xff] %v605
    %670 = vst [vmem:[#allocation2 + $0xe8] sm:$0xff] %v606
    %671 = vst [vmem:[#allocation2 + $0xf0] sm:$0xff] %v607
    %672 = vst [vmem:[#allocation2 + $0xf8] sm:$0xff] %v608
    %673 = vst [vmem:[#allocation2 + $0x100] sm:$0xff] %v609
    %674 = vst [vmem:[#allocation2 + $0x108] sm:$0xff] %v610
    %675 = vst [vmem:[#allocation2 + $0x110] sm:$0xff] %v611
    %676 = vst [vmem:[#allocation2 + $0x118] sm:$0xff] %v612
    %677 = vst [vmem:[#allocation2 + $0x120] sm:$0xff] %v613
    %678 = vst [vmem:[#allocation2 + $0x128] sm:$0xff] %v614
    %679 = vst [vmem:[#allocation2 + $0x130] sm:$0xff] %v615
    %680 = vst [vmem:[#allocation2 + $0x138] sm:$0xff] %v616
    %681 = vst [vmem:[#allocation2 + $0x140] sm:$0xff] %v617
    %682 = vst [vmem:[#allocation2 + $0x148] sm:$0xff] %v618
    %683 = vst [vmem:[#allocation2 + $0x150] sm:$0xff] %v619
    %684 = vst [vmem:[#allocation2 + $0x158] sm:$0xff] %v620
    %685 = vst [vmem:[#allocation2 + $0x160] sm:$0xff] %v621
    %686 = vst [vmem:[#allocation2 + $0x168] sm:$0xff] %v622
    %687 = vst [vmem:[#allocation2 + $0x170] sm:$0xff] %v623
    %688 = vst [vmem:[#allocation2 + $0x178] sm:$0xff] %v624
    %689 = vst [vmem:[#allocation2 + $0x180] sm:$0xff] %v625
    %690 = vst [vmem:[#allocation2 + $0x188] sm:$0xff] %v626
    %691 = vst [vmem:[#allocation2 + $0x190] sm:$0xff] %v627
    %692 = vst [vmem:[#allocation2 + $0x198] sm:$0xff] %v628
    %693 = vst [vmem:[#allocation2 + $0x1a0] sm:$0xff] %v629
    %694 = vst [vmem:[#allocation2 + $0x1a8] sm:$0xff] %v630
    %695 = vst [vmem:[#allocation2 + $0x1b0] sm:$0xff] %v631
    %696 = vst [vmem:[#allocation2 + $0x1b8] sm:$0xff] %v632
    %697 = vst [vmem:[#allocation2 + $0x1c0] sm:$0xff] %v633
    %698 = vst [vmem:[#allocation2 + $0x1c8] sm:$0xff] %v634
    %699 = vst [vmem:[#allocation2 + $0x1d0] sm:$0xff] %v635
    %700 = vst [vmem:[#allocation2 + $0x1d8] sm:$0xff] %v636
    %701 = vst [vmem:[#allocation2 + $0x1e0] sm:$0xff] %v637
    %702 = vst [vmem:[#allocation2 + $0x1e8] sm:$0xff] %v638
    %703 = vst [vmem:[#allocation2 + $0x1f0] sm:$0xff] %v639
    %704 = vst [vmem:[#allocation2 + $0x1f8] sm:$0xff] %v640
    // Predicated region
    $region26: #{tpu_custom_call.1} parent=1 // pred_check
      %p705 = pneg %p43
    $region27: #{tpu_custom_call.1} parent=1 // pred_check_branch
      %707 = sbr.rel (%p705) target = $region29
    $region28: #{tpu_custom_call.1} parent=1 // pred_region
      %v708 = vld [vmem:[#allocation2] sm:$0xff]
      %v709 = vld [vmem:[#allocation2 + $0x8] sm:$0xff]
      %v710 = vld [vmem:[#allocation2 + $0x10] sm:$0xff]
      %v711 = vld [vmem:[#allocation2 + $0x18] sm:$0xff]
      %v712 = vld [vmem:[#allocation2 + $0x20] sm:$0xff]
      %v713 = vld [vmem:[#allocation2 + $0x28] sm:$0xff]
      %v714 = vld [vmem:[#allocation2 + $0x30] sm:$0xff]
      %v715 = vld [vmem:[#allocation2 + $0x38] sm:$0xff]
      %v716 = vld [vmem:[#allocation2 + $0x40] sm:$0xff]
      %v717 = vld [vmem:[#allocation2 + $0x48] sm:$0xff]
      %v718 = vld [vmem:[#allocation2 + $0x50] sm:$0xff]
      %v719 = vld [vmem:[#allocation2 + $0x58] sm:$0xff]
      %v720 = vld [vmem:[#allocation2 + $0x60] sm:$0xff]
      %v721 = vld [vmem:[#allocation2 + $0x68] sm:$0xff]
      %v722 = vld [vmem:[#allocation2 + $0x70] sm:$0xff]
      %v723 = vld [vmem:[#allocation2 + $0x78] sm:$0xff]
      %v724 = vld [vmem:[#allocation2 + $0x80] sm:$0xff]
      %v725 = vld [vmem:[#allocation2 + $0x88] sm:$0xff]
      %v726 = vld [vmem:[#allocation2 + $0x90] sm:$0xff]
      %v727 = vld [vmem:[#allocation2 + $0x98] sm:$0xff]
      %v728 = vld [vmem:[#allocation2 + $0xa0] sm:$0xff]
      %v729 = vld [vmem:[#allocation2 + $0xa8] sm:$0xff]
      %v730 = vld [vmem:[#allocation2 + $0xb0] sm:$0xff]
      %v731 = vld [vmem:[#allocation2 + $0xb8] sm:$0xff]
      %v732 = vld [vmem:[#allocation2 + $0xc0] sm:$0xff]
      %v733 = vld [vmem:[#allocation2 + $0xc8] sm:$0xff]
      %v734 = vld [vmem:[#allocation2 + $0xd0] sm:$0xff]
      %v735 = vld [vmem:[#allocation2 + $0xd8] sm:$0xff]
      %v736 = vld [vmem:[#allocation2 + $0xe0] sm:$0xff]
      %v737 = vld [vmem:[#allocation2 + $0xe8] sm:$0xff]
      %v738 = vld [vmem:[#allocation2 + $0xf0] sm:$0xff]
      %v739 = vld [vmem:[#allocation2 + $0xf8] sm:$0xff]
      %v740 = vld [vmem:[#allocation2 + $0x100] sm:$0xff]
      %v741 = vld [vmem:[#allocation2 + $0x108] sm:$0xff]
      %v742 = vld [vmem:[#allocation2 + $0x110] sm:$0xff]
      %v743 = vld [vmem:[#allocation2 + $0x118] sm:$0xff]
      %v744 = vld [vmem:[#allocation2 + $0x120] sm:$0xff]
      %v745 = vld [vmem:[#allocation2 + $0x128] sm:$0xff]
      %v746 = vld [vmem:[#allocation2 + $0x130] sm:$0xff]
      %v747 = vld [vmem:[#allocation2 + $0x138] sm:$0xff]
      %v748 = vld [vmem:[#allocation2 + $0x140] sm:$0xff]
      %v749 = vld [vmem:[#allocation2 + $0x148] sm:$0xff]
      %v750 = vld [vmem:[#allocation2 + $0x150] sm:$0xff]
      %v751 = vld [vmem:[#allocation2 + $0x158] sm:$0xff]
      %v752 = vld [vmem:[#allocation2 + $0x160] sm:$0xff]
      %v753 = vld [vmem:[#allocation2 + $0x168] sm:$0xff]
      %v754 = vld [vmem:[#allocation2 + $0x170] sm:$0xff]
      %v755 = vld [vmem:[#allocation2 + $0x178] sm:$0xff]
      %v756 = vld [vmem:[#allocation2 + $0x180] sm:$0xff]
      %v757 = vld [vmem:[#allocation2 + $0x188] sm:$0xff]
      %v758 = vld [vmem:[#allocation2 + $0x190] sm:$0xff]
      %v759 = vld [vmem:[#allocation2 + $0x198] sm:$0xff]
      %v760 = vld [vmem:[#allocation2 + $0x1a0] sm:$0xff]
      %v761 = vld [vmem:[#allocation2 + $0x1a8] sm:$0xff]
      %v762 = vld [vmem:[#allocation2 + $0x1b0] sm:$0xff]
      %v763 = vld [vmem:[#allocation2 + $0x1b8] sm:$0xff]
      %v764 = vld [vmem:[#allocation2 + $0x1c0] sm:$0xff]
      %v765 = vld [vmem:[#allocation2 + $0x1c8] sm:$0xff]
      %v766 = vld [vmem:[#allocation2 + $0x1d0] sm:$0xff]
      %v767 = vld [vmem:[#allocation2 + $0x1d8] sm:$0xff]
      %v768 = vld [vmem:[#allocation2 + $0x1e0] sm:$0xff]
      %v769 = vld [vmem:[#allocation2 + $0x1e8] sm:$0xff]
      %v770 = vld [vmem:[#allocation2 + $0x1f0] sm:$0xff]
      %v771 = vld [vmem:[#allocation2 + $0x1f8] sm:$0xff]
      %v772 = vld [vmem:[%s2] sm:$0xf]
      %v774 = vlaneseq
      %v775 = vshrl.u32 %v774, 7
      %v776 = vsub.s32 0, %v775
      %v777 = vrot.slane %v772, %v776
      %v778 = vlaneseq
      %v779 = vshrl.u32 %v778, 7
      %v780 = vsub.s32 1, %v779
      %v781 = vrot.slane %v772, %v780
      %v782 = vlaneseq
      %v783 = vshrl.u32 %v782, 7
      %v784 = vsub.s32 2, %v783
      %v785 = vrot.slane %v772, %v784
      %v786 = vlaneseq
      %v787 = vshrl.u32 %v786, 7
      %v788 = vsub.s32 3, %v787
      %v789 = vrot.slane %v772, %v788
      %v794 = vadd.f32 %v708, %v777
      %v795 = vadd.f32 %v709, %v781
      %v796 = vadd.f32 %v710, %v785
      %v797 = vadd.f32 %v711, %v789
      %v798 = vadd.f32 %v712, %v777
      %v799 = vadd.f32 %v713, %v781
      %v800 = vadd.f32 %v714, %v785
      %v801 = vadd.f32 %v715, %v789
      %v802 = vadd.f32 %v716, %v777
      %v803 = vadd.f32 %v717, %v781
      %v804 = vadd.f32 %v718, %v785
      %v805 = vadd.f32 %v719, %v789
      %v806 = vadd.f32 %v720, %v777
      %v807 = vadd.f32 %v721, %v781
      %v808 = vadd.f32 %v722, %v785
      %v809 = vadd.f32 %v723, %v789
      %v810 = vadd.f32 %v724, %v777
      %v811 = vadd.f32 %v725, %v781
      %v812 = vadd.f32 %v726, %v785
      %v813 = vadd.f32 %v727, %v789
      %v814 = vadd.f32 %v728, %v777
      %v815 = vadd.f32 %v729, %v781
      %v816 = vadd.f32 %v730, %v785
      %v817 = vadd.f32 %v731, %v789
      %v818 = vadd.f32 %v732, %v777
      %v819 = vadd.f32 %v733, %v781
      %v820 = vadd.f32 %v734, %v785
      %v821 = vadd.f32 %v735, %v789
      %v822 = vadd.f32 %v736, %v777
      %v823 = vadd.f32 %v737, %v781
      %v824 = vadd.f32 %v738, %v785
      %v825 = vadd.f32 %v739, %v789
      %v826 = vadd.f32 %v740, %v777
      %v827 = vadd.f32 %v741, %v781
      %v828 = vadd.f32 %v742, %v785
      %v829 = vadd.f32 %v743, %v789
      %v830 = vadd.f32 %v744, %v777
      %v831 = vadd.f32 %v745, %v781
      %v832 = vadd.f32 %v746, %v785
      %v833 = vadd.f32 %v747, %v789
      %v834 = vadd.f32 %v748, %v777
      %v835 = vadd.f32 %v749, %v781
      %v836 = vadd.f32 %v750, %v785
      %v837 = vadd.f32 %v751, %v789
      %v838 = vadd.f32 %v752, %v777
      %v839 = vadd.f32 %v753, %v781
      %v840 = vadd.f32 %v754, %v785
      %v841 = vadd.f32 %v755, %v789
      %v842 = vadd.f32 %v756, %v777
      %v843 = vadd.f32 %v757, %v781
      %v844 = vadd.f32 %v758, %v785
      %v845 = vadd.f32 %v759, %v789
      %v846 = vadd.f32 %v760, %v777
      %v847 = vadd.f32 %v761, %v781
      %v848 = vadd.f32 %v762, %v785
      %v849 = vadd.f32 %v763, %v789
      %v850 = vadd.f32 %v764, %v777
      %v851 = vadd.f32 %v765, %v781
      %v852 = vadd.f32 %v766, %v785
      %v853 = vadd.f32 %v767, %v789
      %v854 = vadd.f32 %v768, %v777
      %v855 = vadd.f32 %v769, %v781
      %v856 = vadd.f32 %v770, %v785
      %v857 = vadd.f32 %v771, %v789
      %858 = vst [vmem:[#allocation8] sm:$0xff] %v794
      %859 = vst [vmem:[#allocation8 + $0x8] sm:$0xff] %v795
      %860 = vst [vmem:[#allocation8 + $0x10] sm:$0xff] %v796
      %861 = vst [vmem:[#allocation8 + $0x18] sm:$0xff] %v797
      %862 = vst [vmem:[#allocation8 + $0x20] sm:$0xff] %v798
      %863 = vst [vmem:[#allocation8 + $0x28] sm:$0xff] %v799
      %864 = vst [vmem:[#allocation8 + $0x30] sm:$0xff] %v800
      %865 = vst [vmem:[#allocation8 + $0x38] sm:$0xff] %v801
      %866 = vst [vmem:[#allocation8 + $0x40] sm:$0xff] %v802
      %867 = vst [vmem:[#allocation8 + $0x48] sm:$0xff] %v803
      %868 = vst [vmem:[#allocation8 + $0x50] sm:$0xff] %v804
      %869 = vst [vmem:[#allocation8 + $0x58] sm:$0xff] %v805
      %870 = vst [vmem:[#allocation8 + $0x60] sm:$0xff] %v806
      %871 = vst [vmem:[#allocation8 + $0x68] sm:$0xff] %v807
      %872 = vst [vmem:[#allocation8 + $0x70] sm:$0xff] %v808
      %873 = vst [vmem:[#allocation8 + $0x78] sm:$0xff] %v809
      %874 = vst [vmem:[#allocation8 + $0x80] sm:$0xff] %v810
      %875 = vst [vmem:[#allocation8 + $0x88] sm:$0xff] %v811
      %876 = vst [vmem:[#allocation8 + $0x90] sm:$0xff] %v812
      %877 = vst [vmem:[#allocation8 + $0x98] sm:$0xff] %v813
      %878 = vst [vmem:[#allocation8 + $0xa0] sm:$0xff] %v814
      %879 = vst [vmem:[#allocation8 + $0xa8] sm:$0xff] %v815
      %880 = vst [vmem:[#allocation8 + $0xb0] sm:$0xff] %v816
      %881 = vst [vmem:[#allocation8 + $0xb8] sm:$0xff] %v817
      %882 = vst [vmem:[#allocation8 + $0xc0] sm:$0xff] %v818
      %883 = vst [vmem:[#allocation8 + $0xc8] sm:$0xff] %v819
      %884 = vst [vmem:[#allocation8 + $0xd0] sm:$0xff] %v820
      %885 = vst [vmem:[#allocation8 + $0xd8] sm:$0xff] %v821
      %886 = vst [vmem:[#allocation8 + $0xe0] sm:$0xff] %v822
      %887 = vst [vmem:[#allocation8 + $0xe8] sm:$0xff] %v823
      %888 = vst [vmem:[#allocation8 + $0xf0] sm:$0xff] %v824
      %889 = vst [vmem:[#allocation8 + $0xf8] sm:$0xff] %v825
      %890 = vst [vmem:[#allocation8 + $0x100] sm:$0xff] %v826
      %891 = vst [vmem:[#allocation8 + $0x108] sm:$0xff] %v827
      %892 = vst [vmem:[#allocation8 + $0x110] sm:$0xff] %v828
      %893 = vst [vmem:[#allocation8 + $0x118] sm:$0xff] %v829
      %894 = vst [vmem:[#allocation8 + $0x120] sm:$0xff] %v830
      %895 = vst [vmem:[#allocation8 + $0x128] sm:$0xff] %v831
      %896 = vst [vmem:[#allocation8 + $0x130] sm:$0xff] %v832
      %897 = vst [vmem:[#allocation8 + $0x138] sm:$0xff] %v833
      %898 = vst [vmem:[#allocation8 + $0x140] sm:$0xff] %v834
      %899 = vst [vmem:[#allocation8 + $0x148] sm:$0xff] %v835
      %900 = vst [vmem:[#allocation8 + $0x150] sm:$0xff] %v836
      %901 = vst [vmem:[#allocation8 + $0x158] sm:$0xff] %v837
      %902 = vst [vmem:[#allocation8 + $0x160] sm:$0xff] %v838
      %903 = vst [vmem:[#allocation8 + $0x168] sm:$0xff] %v839
      %904 = vst [vmem:[#allocation8 + $0x170] sm:$0xff] %v840
      %905 = vst [vmem:[#allocation8 + $0x178] sm:$0xff] %v841
      %906 = vst [vmem:[#allocation8 + $0x180] sm:$0xff] %v842
      %907 = vst [vmem:[#allocation8 + $0x188] sm:$0xff] %v843
      %908 = vst [vmem:[#allocation8 + $0x190] sm:$0xff] %v844
      %909 = vst [vmem:[#allocation8 + $0x198] sm:$0xff] %v845
      %910 = vst [vmem:[#allocation8 + $0x1a0] sm:$0xff] %v846
      %911 = vst [vmem:[#allocation8 + $0x1a8] sm:$0xff] %v847
      %912 = vst [vmem:[#allocation8 + $0x1b0] sm:$0xff] %v848
      %913 = vst [vmem:[#allocation8 + $0x1b8] sm:$0xff] %v849
      %914 = vst [vmem:[#allocation8 + $0x1c0] sm:$0xff] %v850
      %915 = vst [vmem:[#allocation8 + $0x1c8] sm:$0xff] %v851
      %916 = vst [vmem:[#allocation8 + $0x1d0] sm:$0xff] %v852
      %917 = vst [vmem:[#allocation8 + $0x1d8] sm:$0xff] %v853
      %918 = vst [vmem:[#allocation8 + $0x1e0] sm:$0xff] %v854
      %919 = vst [vmem:[#allocation8 + $0x1e8] sm:$0xff] %v855
      %920 = vst [vmem:[#allocation8 + $0x1f0] sm:$0xff] %v856
      %921 = vst [vmem:[#allocation8 + $0x1f8] sm:$0xff] %v857
    $region29: #{tpu_custom_call.1} parent=1 // pred_fallthru
      _
    // Predicated region
    $region30: #{tpu_custom_call.1} parent=1 // pred_check
      _
    $region31: #{tpu_custom_call.1} parent=1 // pred_check_branch
      %923 = sbr.rel (0) target = $region33
    $region32: #{tpu_custom_call.1} parent=1 // pred_region
      %s925 = ssub.s32 8192, 8192
      %926 = vsyncadd [#allocation5], %s925
      %s927 = sshll.u32 [#allocation8], 4
      %s928 = int_to_ptr.vmem [resolvable:$true] %s927
      %933 = dma.vmem_to_hbm [thread:$0]  %s928, 8192, %s3, [#allocation5], 512, 512, 32
    $region33: #{tpu_custom_call.1} parent=1 // pred_fallthru
      _
    // Predicated region
    $region34: #{tpu_custom_call.1} parent=1 // pred_check
      _
    $region35: #{tpu_custom_call.1} parent=1 // pred_check_branch
      %935 = sbr.rel (0) target = $region37
    $region36: #{tpu_custom_call.1} parent=1 // pred_region
      %936 = dma.done [#allocation5], 8192
    $region37: #{tpu_custom_call.1} parent=1 // pred_fallthru
      _
    %937 = vsyncpa [#allocation4], 1
    %938 = vsyncpa [#allocation7], 1
    %939 = vsyncpa [#allocation5], 1

</llo_original>
